<compile_context>
chip_gen: v5e
topology: v5e:2x2
jax: 0.10.0
libtpu: 0.0.40
codegen_flags: <defaults>
</compile_context>

<pallas_src>
import jax
import jax.numpy as jnp
from jax.experimental import pallas as pl
from jax.experimental.pallas import tpu as pltpu

CONTEXT_LENGTH = 71
N_BINS = 64
N_CHARS = 25
N_EMBED = 8
K_FOLD = CONTEXT_LENGTH * N_CHARS          # 1775
K_PAD = 1792                               # 14 * 128 = 7 * 256 (lane/MXU exact)


def _round_up(x, m):
    return (x + m - 1) // m * m


def _ffwd_kernel(idx_ref, cpat_ref, rmat_ref, wf_ref, b_ref, o_ref):
    # Build the (TB, K_PAD) one-hot selector with no gathers / reshapes:
    #   rep[b, k]    = idx[b, k // N_CHARS]   (replication via a 0/1 matmul)
    #   onehot[b, k] = 1.0 iff rep[b, k] == (k % N_CHARS)   (-1 on padded k)
    # idx (<=24) and rmat (0/1) are exact in bf16; accumulation is f32, so the
    # equality compare below is exact.
    idx_bf = idx_ref[...].astype(jnp.bfloat16)                       # (TB, 71)
    rep = jnp.dot(idx_bf, rmat_ref[...],
                  preferred_element_type=jnp.float32)                # (TB, K_PAD) f32, exact

    # compare in f32 (v5e VPU has no bf16 ALUs); cast result straight to bf16
    # so the second MXU pass gets a native bf16 operand.
    onehot = (rep == cpat_ref[...]).astype(jnp.bfloat16)             # (TB, K_PAD)

    # logits = onehot @ W_fold + b  ==  flatten(emb[idx]) @ W + b
    logits = jnp.dot(onehot, wf_ref[...],
                     preferred_element_type=jnp.float32) + b_ref[...]

    # numerically-stable softmax; exact divide (denominator is only (TB, 1))
    m = jnp.max(logits, axis=-1, keepdims=True)
    e = jnp.exp(logits - m)
    denom = jnp.sum(e, axis=-1, keepdims=True)
    o_ref[...] = (e / denom).astype(o_ref.dtype)


def feedforward_pallas(x_idx, emb_table, w, b, *, tile_b=512):
    """
    x_idx:     (B, CONTEXT_LENGTH) int32 indices in [0, N_CHARS)
    emb_table: (N_CHARS, N_EMBED) f32
    w:         (N_EMBED*CONTEXT_LENGTH, N_BINS) f32  (transposed vs PyTorch)
    b:         (N_BINS,) f32
    returns probs (B, N_BINS) f32
    """
    B = x_idx.shape[0]
    xi = x_idx.astype(jnp.int32)

    # Fold the embedding into the hidden weight (done once; tiny: 1792x64),
    # zero-pad K to 1792 and cast to bf16 once here (not per grid step).
    w3 = w.reshape(CONTEXT_LENGTH, N_EMBED, N_BINS)
    w_fold = jnp.einsum(
        "ce,pen->pcn", emb_table, w3,
        precision=jax.lax.Precision.HIGHEST).reshape(K_FOLD, N_BINS)
    w_fold = jnp.pad(w_fold, ((0, K_PAD - K_FOLD), (0, 0))).astype(jnp.bfloat16)
    b2 = b.reshape(1, N_BINS).astype(jnp.float32)

    # Constants for the in-kernel one-hot construction (K padded to 1792).
    k_ids = jnp.arange(K_PAD, dtype=jnp.int32)
    cpat = jnp.where(k_ids < K_FOLD,
                     (k_ids % N_CHARS).astype(jnp.float32),
                     -1.0).reshape(1, K_PAD)                         # k % 25, -1 on pad
    rmat = ((k_ids[None, :] // N_CHARS)
            == jnp.arange(CONTEXT_LENGTH, dtype=jnp.int32)[:, None]
            ).astype(jnp.bfloat16)                                   # (71, K_PAD), pad cols = 0

    # Batch tiling: multiple of 8 sublanes; cap so the grid keeps >= 2 steps
    # (v7x megacore) whenever B > 8; pad batch up to a tile multiple.
    TB = min(tile_b, _round_up(B, 8))
    if B > 8:
        TB = min(TB, _round_up(pl.cdiv(B, 2), 8))
    TB = _round_up(TB, 8)
    Bp = _round_up(B, TB)
    if Bp != B:
        xi = jnp.pad(xi, ((0, Bp - B), (0, 0)))

    out = pl.pallas_call(
        _ffwd_kernel,
        out_shape=jax.ShapeDtypeStruct((Bp, N_BINS), jnp.float32),
        grid_spec=pltpu.PrefetchScalarGridSpec(
            num_scalar_prefetch=0,
            grid=(Bp // TB,),
            in_specs=[
                pl.BlockSpec((TB, CONTEXT_LENGTH), lambda i: (i, 0)),    # idx tile
                pl.BlockSpec((1, K_PAD), lambda i: (0, 0)),              # cpat (f32)
                pl.BlockSpec((CONTEXT_LENGTH, K_PAD), lambda i: (0, 0)), # R (bf16)
                pl.BlockSpec((K_PAD, N_BINS), lambda i: (0, 0)),         # W_fold (bf16)
                pl.BlockSpec((1, N_BINS), lambda i: (0, 0)),             # bias
            ],
            out_specs=pl.BlockSpec((TB, N_BINS), lambda i: (i, 0)),
        ),
        compiler_params=pltpu.CompilerParams(
            dimension_semantics=("parallel",)),
    )(xi, cpat, rmat, w_fold, b2)
    return out[:B]


def feedforward_ref(x_idx, emb_table, w, b):
    xf = jnp.take(emb_table, x_idx, axis=0).reshape(x_idx.shape[0], -1)
    logits = jnp.dot(xf, w, precision=jax.lax.Precision.HIGHEST) + b
    return jax.nn.softmax(logits, axis=-1)


if __name__ == "__main__":
    key = jax.random.PRNGKey(0)
    k_idx, k_emb, k_w, k_b = jax.random.split(key, 4)

    B = 4
    x_idx = jax.random.randint(k_idx, (B, CONTEXT_LENGTH), 0, N_CHARS,
                               dtype=jnp.int32)

    # deterministic parameter init (synthetic, not a checkpoint)
    emb_table = jax.random.normal(k_emb, (N_CHARS, N_EMBED), jnp.float32)
    fan_in = N_EMBED * CONTEXT_LENGTH
    # PyTorch Linear weight is (out, in); store transposed as (in, out) for x @ W
    w = jax.random.uniform(k_w, (fan_in, N_BINS), jnp.float32,
                           minval=-1.0, maxval=1.0) / jnp.sqrt(fan_in)
    b = jax.random.uniform(k_b, (N_BINS,), jnp.float32,
                           minval=-1.0, maxval=1.0) / jnp.sqrt(fan_in)

    fwd = jax.jit(feedforward_pallas)
    probs = fwd(x_idx, emb_table, w, b)
    probs = jax.block_until_ready(probs)

    ref = feedforward_ref(x_idx, emb_table, w, b)
    assert probs.shape == (B, N_BINS)
    # 2e-3 tolerance covers the bf16 rounding of the folded weight
    assert jnp.allclose(probs, ref, atol=2e-3, rtol=2e-3), "mismatch vs reference"
    # exact softmax divide -> rows sum to 1 to f32 precision
    assert jnp.allclose(jnp.sum(probs, axis=-1), 1.0, atol=1e-4)

    print("KERNEL_OK")
</pallas_src>

<mosaic_0001>
module attributes {stable_mosaic.version = 11 : i64} {
  func.func @_ffwd_kernel(%arg0: i32, %arg1: memref<8x71xi32, #tpu.memory_space<vmem>>, %arg2: memref<1x1792xf32, #tpu.memory_space<vmem>>, %arg3: memref<71x1792xbf16, #tpu.memory_space<vmem>>, %arg4: memref<1792x64xbf16, #tpu.memory_space<vmem>>, %arg5: memref<1x64xf32, #tpu.memory_space<vmem>>, %arg6: memref<8x64xf32, #tpu.memory_space<vmem>>) attributes {dimension_semantics = [#tpu.dimension_semantics<parallel>], iteration_bounds = array<i64: 1>, scalar_prefetch = 0 : i64, scratch_operands = 0 : i64, tpu.core_type = #tpu.core_type<tc>, window_params = [{transform_indices = @transform_0, window_bounds = array<i64: 8, 71>}, {pipeline_mode = #tpu.pipeline_mode<synchronous>, transform_indices = @transform_1, window_bounds = array<i64: 1, 1792>}, {pipeline_mode = #tpu.pipeline_mode<synchronous>, transform_indices = @transform_2, window_bounds = array<i64: 71, 1792>}, {pipeline_mode = #tpu.pipeline_mode<synchronous>, transform_indices = @transform_3, window_bounds = array<i64: 1792, 64>}, {pipeline_mode = #tpu.pipeline_mode<synchronous>, transform_indices = @transform_4, window_bounds = array<i64: 1, 64>}, {transform_indices = @transform_5, window_bounds = array<i64: 8, 64>}]} {
    %c0 = arith.constant 0 : index
    %c0_0 = arith.constant 0 : index
    %0 = vector.load %arg1[%c0, %c0_0] : memref<8x71xi32, #tpu.memory_space<vmem>>, vector<8x71xi32>
    %1 = arith.sitofp %0 : vector<8x71xi32> to vector<8x71xbf16>
    %c0_1 = arith.constant 0 : index
    %c0_2 = arith.constant 0 : index
    %2 = vector.load %arg3[%c0_1, %c0_2] : memref<71x1792xbf16, #tpu.memory_space<vmem>>, vector<71x1792xbf16>
    %cst = arith.constant dense<0.000000e+00> : vector<8x1792xf32>
    %3 = tpu.matmul %1, %2, %cst {dimension_numbers = #tpu.dot_dimension_numbers<[1], [0], [0], [1], [0, 0, 1, 1], [], []>} : vector<8x71xbf16>, vector<71x1792xbf16>, vector<8x1792xf32> -> vector<8x1792xf32>
    %c0_3 = arith.constant 0 : index
    %c0_4 = arith.constant 0 : index
    %4 = vector.load %arg2[%c0_3, %c0_4] : memref<1x1792xf32, #tpu.memory_space<vmem>>, vector<1x1792xf32>
    %5 = vector.broadcast %4 : vector<1x1792xf32> to vector<8x1792xf32>
    %6 = arith.cmpf oeq, %3, %5 : vector<8x1792xf32>
    %7 = arith.extui %6 : vector<8x1792xi1> to vector<8x1792xi32>
    %8 = arith.sitofp %7 : vector<8x1792xi32> to vector<8x1792xf32>
    %9 = arith.truncf %8 : vector<8x1792xf32> to vector<8x1792xbf16>
    %c0_5 = arith.constant 0 : index
    %c0_6 = arith.constant 0 : index
    %10 = vector.load %arg4[%c0_5, %c0_6] : memref<1792x64xbf16, #tpu.memory_space<vmem>>, vector<1792x64xbf16>
    %cst_7 = arith.constant dense<0.000000e+00> : vector<8x64xf32>
    %11 = tpu.matmul %9, %10, %cst_7 {dimension_numbers = #tpu.dot_dimension_numbers<[1], [0], [0], [1], [0, 0, 1, 1], [], []>} : vector<8x1792xbf16>, vector<1792x64xbf16>, vector<8x64xf32> -> vector<8x64xf32>
    %c0_8 = arith.constant 0 : index
    %c0_9 = arith.constant 0 : index
    %12 = vector.load %arg5[%c0_8, %c0_9] : memref<1x64xf32, #tpu.memory_space<vmem>>, vector<1x64xf32>
    %13 = vector.broadcast %12 : vector<1x64xf32> to vector<8x64xf32>
    %14 = arith.addf %11, %13 : vector<8x64xf32>
    %cst_10 = arith.constant dense<0xFF800000> : vector<8xf32>
    %15 = vector.multi_reduction <maximumf>, %14, %cst_10 [1] : vector<8x64xf32> to vector<8xf32>
    %16 = vector.shape_cast %15 : vector<8xf32> to vector<8x1xf32>
    %17 = vector.broadcast %16 : vector<8x1xf32> to vector<8x64xf32>
    %18 = arith.subf %14, %17 : vector<8x64xf32>
    %19 = math.exp %18 : vector<8x64xf32>
    %cst_11 = arith.constant dense<0.000000e+00> : vector<8xf32>
    %20 = vector.multi_reduction <add>, %19, %cst_11 [1] : vector<8x64xf32> to vector<8xf32>
    %21 = vector.shape_cast %20 : vector<8xf32> to vector<8x1xf32>
    %22 = vector.broadcast %21 : vector<8x1xf32> to vector<8x64xf32>
    %23 = arith.divf %19, %22 : vector<8x64xf32>
    %c0_12 = arith.constant 0 : index
    %c0_13 = arith.constant 0 : index
    %24 = vector.load %arg6[%c0_12, %c0_13] : memref<8x64xf32, #tpu.memory_space<vmem>>, vector<8x64xf32>
    tpu.vector_store %arg6[%c0_12, %c0_13], %23 {strides = array<i32>} : memref<8x64xf32, #tpu.memory_space<vmem>>, vector<8x64xf32>,
    return
  }
  func.func @transform_0(%arg0: i32) -> (i32, i32) {
    %c0_i32 = arith.constant 0 : i32
    %c0_i32_0 = arith.constant 0 : i32
    return %arg0, %c0_i32 : i32, i32
  }
  func.func @transform_1(%arg0: i32) -> (i32, i32) {
    %c0_i32 = arith.constant 0 : i32
    %c0_i32_0 = arith.constant 0 : i32
    %c0_i32_1 = arith.constant 0 : i32
    return %c0_i32, %c0_i32_0 : i32, i32
  }
  func.func @transform_2(%arg0: i32) -> (i32, i32) {
    %c0_i32 = arith.constant 0 : i32
    %c0_i32_0 = arith.constant 0 : i32
    %c0_i32_1 = arith.constant 0 : i32
    return %c0_i32, %c0_i32_0 : i32, i32
  }
  func.func @transform_3(%arg0: i32) -> (i32, i32) {
    %c0_i32 = arith.constant 0 : i32
    %c0_i32_0 = arith.constant 0 : i32
    %c0_i32_1 = arith.constant 0 : i32
    return %c0_i32, %c0_i32_0 : i32, i32
  }
  func.func @transform_4(%arg0: i32) -> (i32, i32) {
    %c0_i32 = arith.constant 0 : i32
    %c0_i32_0 = arith.constant 0 : i32
    %c0_i32_1 = arith.constant 0 : i32
    return %c0_i32, %c0_i32_0 : i32, i32
  }
  func.func @transform_5(%arg0: i32) -> (i32, i32) {
    %c0_i32 = arith.constant 0 : i32
    %c0_i32_0 = arith.constant 0 : i32
    return %arg0, %c0_i32 : i32, i32
  }
}

</mosaic_0001>

<llo_original>
// kernel: feedforward_pallas.1
$region0: #{feedforward_pallas.1}
  #allocation0 [shape = 'u32[]', space=smem, size = 0x4, offset = 0x4, fixed_abs, tag = 'smem constant byte address 0x4 - core index']
  #allocation1 [shape = 'u32[72,128]{1,0:T(1,128)}', space=vmem, size = 0x9000, scoped, tag = 'internal scratch']
  %s0 = inlined_call_operand.vmem [shape: s32[8,71], index: 0, kind: input, shape index: {}]
  %s1 = inlined_call_operand.vmem [shape: f32[1,1792], index: 1, kind: input, shape index: {}]
  %s2 = inlined_call_operand.vmem [shape: bf16[71,1792], index: 2, kind: input, shape index: {}]
  %s3 = inlined_call_operand.vmem [shape: bf16[1792,64], index: 3, kind: input, shape index: {}]
  %s4 = inlined_call_operand.vmem [shape: f32[1,64], index: 4, kind: input, shape index: {}]
  %s5 = inlined_call_operand.vmem [shape: f32[8,64], index: 5, kind: output, shape index: {}]
  %s6 = sld [smem:[#allocation0]]
  $region30: #{feedforward_pallas.1} parent=0
    _
  %s8 = ssub.s32 1, %s6
  %s9 = scalar_select 0, %s8, %s6
  // Predicated region
  $region2: #{feedforward_pallas.1} parent=0 // pred_check
    _
  $region3: #{feedforward_pallas.1} parent=0 // pred_check_branch
    %11 = sbr.rel (0) target = $region5
  $region4: #{feedforward_pallas.1} parent=0 // pred_region
    _
  $region5: #{feedforward_pallas.1} parent=0 // pred_fallthru
    _
  // Predicated region
  $region6: #{feedforward_pallas.1} parent=0 // pred_check
    _
  $region7: #{feedforward_pallas.1} parent=0 // pred_check_branch
    %13 = sbr.rel (0) target = $region9
  $region8: #{feedforward_pallas.1} parent=0 // pred_region
    _
  $region9: #{feedforward_pallas.1} parent=0 // pred_fallthru
    _
  // Predicated region
  $region10: #{feedforward_pallas.1} parent=0 // pred_check
    _
  $region11: #{feedforward_pallas.1} parent=0 // pred_check_branch
    %15 = sbr.rel (0) target = $region13
  $region12: #{feedforward_pallas.1} parent=0 // pred_region
    _
  $region13: #{feedforward_pallas.1} parent=0 // pred_fallthru
    _
  // Predicated region
  $region14: #{feedforward_pallas.1} parent=0 // pred_check
    _
  $region15: #{feedforward_pallas.1} parent=0 // pred_check_branch
    %17 = sbr.rel (0) target = $region17
  $region16: #{feedforward_pallas.1} parent=0 // pred_region
    _
  $region17: #{feedforward_pallas.1} parent=0 // pred_fallthru
    _
  // Predicated region
  $region18: #{feedforward_pallas.1} parent=0 // pred_check
    _
  $region19: #{feedforward_pallas.1} parent=0 // pred_check_branch
    %19 = sbr.rel (0) target = $region21
  $region20: #{feedforward_pallas.1} parent=0 // pred_region
    _
  $region21: #{feedforward_pallas.1} parent=0 // pred_fallthru
    _
  %v21 = vld [vmem:[%s0] sm:$0xff]
  %v22 = vcvt.s32.f32 %v21
  %v23 = vpack.c.bf16 %v22, %v22
  %v24 = vld [vmem:[%s2] sm:$0xff]
  %v25 = vld [vmem:[%s2 + $0x8] sm:$0xff]
  %v26 = vld [vmem:[%s2 + $0x10] sm:$0xff]
  %v27 = vld [vmem:[%s2 + $0x18] sm:$0xff]
  %v28 = vld [vmem:[%s2 + $0x20] sm:$0xff]
  %v29 = vld [vmem:[%s2 + $0x28] sm:$0xff]
  %v30 = vld [vmem:[%s2 + $0x30] sm:$0xff]
  %v31 = vld [vmem:[%s2 + $0x38] sm:$0xff]
  %v32 = vld [vmem:[%s2 + $0x40] sm:$0xff]
  %v33 = vld [vmem:[%s2 + $0x48] sm:$0xff]
  %v34 = vld [vmem:[%s2 + $0x50] sm:$0xff]
  %v35 = vld [vmem:[%s2 + $0x58] sm:$0xff]
  %v36 = vld [vmem:[%s2 + $0x60] sm:$0xff]
  %v37 = vld [vmem:[%s2 + $0x68] sm:$0xff]
  %v38 = vld [vmem:[%s2 + $0x70] sm:$0xff]
  %v39 = vld [vmem:[%s2 + $0x78] sm:$0xff]
  %v40 = vld [vmem:[%s2 + $0x80] sm:$0xff]
  %v41 = vld [vmem:[%s2 + $0x88] sm:$0xff]
  %v42 = vld [vmem:[%s2 + $0x90] sm:$0xff]
  %v43 = vld [vmem:[%s2 + $0x98] sm:$0xff]
  %v44 = vld [vmem:[%s2 + $0xa0] sm:$0xff]
  %v45 = vld [vmem:[%s2 + $0xa8] sm:$0xff]
  %v46 = vld [vmem:[%s2 + $0xb0] sm:$0xff]
  %v47 = vld [vmem:[%s2 + $0xb8] sm:$0xff]
  %v48 = vld [vmem:[%s2 + $0xc0] sm:$0xff]
  %v49 = vld [vmem:[%s2 + $0xc8] sm:$0xff]
  %v50 = vld [vmem:[%s2 + $0xd0] sm:$0xff]
  %v51 = vld [vmem:[%s2 + $0xd8] sm:$0xff]
  %v52 = vld [vmem:[%s2 + $0xe0] sm:$0xff]
  %v53 = vld [vmem:[%s2 + $0xe8] sm:$0xff]
  %v54 = vld [vmem:[%s2 + $0xf0] sm:$0xff]
  %v55 = vld [vmem:[%s2 + $0xf8] sm:$0xff]
  %v56 = vld [vmem:[%s2 + $0x100] sm:$0xff]
  %v57 = vld [vmem:[%s2 + $0x108] sm:$0xff]
  %v58 = vld [vmem:[%s2 + $0x110] sm:$0xff]
  %v59 = vld [vmem:[%s2 + $0x118] sm:$0xff]
  %v60 = vld [vmem:[%s2 + $0x120] sm:$0xff]
  %v61 = vld [vmem:[%s2 + $0x128] sm:$0xff]
  %v62 = vld [vmem:[%s2 + $0x130] sm:$0xff]
  %v63 = vld [vmem:[%s2 + $0x138] sm:$0xff]
  %v64 = vld [vmem:[%s2 + $0x140] sm:$0xff]
  %v65 = vld [vmem:[%s2 + $0x148] sm:$0xff]
  %v66 = vld [vmem:[%s2 + $0x150] sm:$0xff]
  %v67 = vld [vmem:[%s2 + $0x158] sm:$0xff]
  %v68 = vld [vmem:[%s2 + $0x160] sm:$0xff]
  %v69 = vld [vmem:[%s2 + $0x168] sm:$0xff]
  %v70 = vld [vmem:[%s2 + $0x170] sm:$0xff]
  %v71 = vld [vmem:[%s2 + $0x178] sm:$0xff]
  %v72 = vld [vmem:[%s2 + $0x180] sm:$0xff]
  %v73 = vld [vmem:[%s2 + $0x188] sm:$0xff]
  %v74 = vld [vmem:[%s2 + $0x190] sm:$0xff]
  %v75 = vld [vmem:[%s2 + $0x198] sm:$0xff]
  %v76 = vld [vmem:[%s2 + $0x1a0] sm:$0xff]
  %v77 = vld [vmem:[%s2 + $0x1a8] sm:$0xff]
  %v78 = vld [vmem:[%s2 + $0x1b0] sm:$0xff]
  %v79 = vld [vmem:[%s2 + $0x1b8] sm:$0xff]
  %v80 = vld [vmem:[%s2 + $0x1c0] sm:$0xff]
  %v81 = vld [vmem:[%s2 + $0x1c8] sm:$0xff]
  %v82 = vld [vmem:[%s2 + $0x1d0] sm:$0xff]
  %v83 = vld [vmem:[%s2 + $0x1d8] sm:$0xff]
  %v84 = vld [vmem:[%s2 + $0x1e0] sm:$0xff]
  %v85 = vld [vmem:[%s2 + $0x1e8] sm:$0xff]
  %v86 = vld [vmem:[%s2 + $0x1f0] sm:$0xff]
  %v150 = vunpack.c.l.b16 %v24
  %v151 = vunpack.c.h.b16 %v24
  %v152 = vunpack.c.l.b16 %v25
  %v153 = vunpack.c.h.b16 %v25
  %v154 = vunpack.c.l.b16 %v26
  %v155 = vunpack.c.h.b16 %v26
  %v156 = vunpack.c.l.b16 %v27
  %v157 = vunpack.c.h.b16 %v27
  %v158 = vunpack.c.l.b16 %v28
  %v159 = vunpack.c.h.b16 %v28
  %v160 = vunpack.c.l.b16 %v29
  %v161 = vunpack.c.h.b16 %v29
  %v162 = vunpack.c.l.b16 %v30
  %v163 = vunpack.c.h.b16 %v30
  %v164 = vunpack.c.l.b16 %v31
  %v165 = vunpack.c.h.b16 %v31
  %v166 = vunpack.c.l.b16 %v32
  %v167 = vunpack.c.h.b16 %v32
  %v168 = vunpack.c.l.b16 %v33
  %v169 = vunpack.c.h.b16 %v33
  %v170 = vunpack.c.l.b16 %v34
  %v171 = vunpack.c.h.b16 %v34
  %v172 = vunpack.c.l.b16 %v35
  %v173 = vunpack.c.h.b16 %v35
  %v174 = vunpack.c.l.b16 %v36
  %v175 = vunpack.c.h.b16 %v36
  %v176 = vunpack.c.l.b16 %v37
  %v177 = vunpack.c.h.b16 %v37
  %v178 = vunpack.c.l.b16 %v38
  %v179 = vunpack.c.h.b16 %v38
  %v180 = vunpack.c.l.b16 %v39
  %v181 = vunpack.c.h.b16 %v39
  %v182 = vunpack.c.l.b16 %v40
  %v183 = vunpack.c.h.b16 %v40
  %v184 = vunpack.c.l.b16 %v41
  %v185 = vunpack.c.h.b16 %v41
  %v186 = vunpack.c.l.b16 %v42
  %v187 = vunpack.c.h.b16 %v42
  %v188 = vunpack.c.l.b16 %v43
  %v189 = vunpack.c.h.b16 %v43
  %v190 = vunpack.c.l.b16 %v44
  %v191 = vunpack.c.h.b16 %v44
  %v192 = vunpack.c.l.b16 %v45
  %v193 = vunpack.c.h.b16 %v45
  %v194 = vunpack.c.l.b16 %v46
  %v195 = vunpack.c.h.b16 %v46
  %v196 = vunpack.c.l.b16 %v47
  %v197 = vunpack.c.h.b16 %v47
  %v198 = vunpack.c.l.b16 %v48
  %v199 = vunpack.c.h.b16 %v48
  %v200 = vunpack.c.l.b16 %v49
  %v201 = vunpack.c.h.b16 %v49
  %v202 = vunpack.c.l.b16 %v50
  %v203 = vunpack.c.h.b16 %v50
  %v204 = vunpack.c.l.b16 %v51
  %v205 = vunpack.c.h.b16 %v51
  %v206 = vunpack.c.l.b16 %v52
  %v207 = vunpack.c.h.b16 %v52
  %v208 = vunpack.c.l.b16 %v53
  %v209 = vunpack.c.h.b16 %v53
  %v210 = vunpack.c.l.b16 %v54
  %v211 = vunpack.c.h.b16 %v54
  %v212 = vunpack.c.l.b16 %v55
  %v213 = vunpack.c.h.b16 %v55
  %v214 = vunpack.c.l.b16 %v56
  %v215 = vunpack.c.h.b16 %v56
  %v216 = vunpack.c.l.b16 %v57
  %v217 = vunpack.c.h.b16 %v57
  %v218 = vunpack.c.l.b16 %v58
  %v219 = vunpack.c.h.b16 %v58
  %v220 = vunpack.c.l.b16 %v59
  %v221 = vunpack.c.h.b16 %v59
  %v222 = vunpack.c.l.b16 %v60
  %v223 = vunpack.c.h.b16 %v60
  %v224 = vunpack.c.l.b16 %v61
  %v225 = vunpack.c.h.b16 %v61
  %v226 = vunpack.c.l.b16 %v62
  %v227 = vunpack.c.h.b16 %v62
  %v228 = vunpack.c.l.b16 %v63
  %v229 = vunpack.c.h.b16 %v63
  %v230 = vunpack.c.l.b16 %v64
  %v231 = vunpack.c.h.b16 %v64
  %v232 = vunpack.c.l.b16 %v65
  %v233 = vunpack.c.h.b16 %v65
  %v234 = vunpack.c.l.b16 %v66
  %v235 = vunpack.c.h.b16 %v66
  %v236 = vunpack.c.l.b16 %v67
  %v237 = vunpack.c.h.b16 %v67
  %v238 = vunpack.c.l.b16 %v68
  %v239 = vunpack.c.h.b16 %v68
  %v240 = vunpack.c.l.b16 %v69
  %v241 = vunpack.c.h.b16 %v69
  %v242 = vunpack.c.l.b16 %v70
  %v243 = vunpack.c.h.b16 %v70
  %v244 = vunpack.c.l.b16 %v71
  %v245 = vunpack.c.h.b16 %v71
  %v246 = vunpack.c.l.b16 %v72
  %v247 = vunpack.c.h.b16 %v72
  %v248 = vunpack.c.l.b16 %v73
  %v249 = vunpack.c.h.b16 %v73
  %v250 = vunpack.c.l.b16 %v74
  %v251 = vunpack.c.h.b16 %v74
  %v252 = vunpack.c.l.b16 %v75
  %v253 = vunpack.c.h.b16 %v75
  %v254 = vunpack.c.l.b16 %v76
  %v255 = vunpack.c.h.b16 %v76
  %v256 = vunpack.c.l.b16 %v77
  %v257 = vunpack.c.h.b16 %v77
  %v258 = vunpack.c.l.b16 %v78
  %v259 = vunpack.c.h.b16 %v78
  %v260 = vunpack.c.l.b16 %v79
  %v261 = vunpack.c.h.b16 %v79
  %v262 = vunpack.c.l.b16 %v80
  %v263 = vunpack.c.h.b16 %v80
  %v264 = vunpack.c.l.b16 %v81
  %v265 = vunpack.c.h.b16 %v81
  %v266 = vunpack.c.l.b16 %v82
  %v267 = vunpack.c.h.b16 %v82
  %v268 = vunpack.c.l.b16 %v83
  %v269 = vunpack.c.h.b16 %v83
  %v270 = vunpack.c.l.b16 %v84
  %v271 = vunpack.c.h.b16 %v84
  %v272 = vunpack.c.l.b16 %v85
  %v273 = vunpack.c.h.b16 %v85
  %v274 = vunpack.c.l.b16 %v86
  %v275 = vunpack.c.h.b16 %v86
  %v276 = vpack.c.b16 %v164, %v150
  %v277 = vpack.c.b16 %v165, %v151
  %v278 = vpack.c.b16 %v166, %v152
  %v279 = vpack.c.b16 %v167, %v153
  %v280 = vpack.c.b16 %v168, %v154
  %v281 = vpack.c.b16 %v169, %v155
  %v282 = vpack.c.b16 %v170, %v156
  %v283 = vpack.c.b16 %v171, %v157
  %v284 = vpack.c.b16 %v172, %v158
  %v285 = vpack.c.b16 %v173, %v159
  %v286 = vpack.c.b16 %v174, %v160
  %v287 = vpack.c.b16 %v175, %v161
  %v288 = vpack.c.b16 %v176, %v162
  %v289 = vpack.c.b16 %v177, %v163
  %v290 = vpack.c.b16 %v192, %v178
  %v291 = vpack.c.b16 %v193, %v179
  %v292 = vpack.c.b16 %v194, %v180
  %v293 = vpack.c.b16 %v195, %v181
  %v294 = vpack.c.b16 %v196, %v182
  %v295 = vpack.c.b16 %v197, %v183
  %v296 = vpack.c.b16 %v198, %v184
  %v297 = vpack.c.b16 %v199, %v185
  %v298 = vpack.c.b16 %v200, %v186
  %v299 = vpack.c.b16 %v201, %v187
  %v300 = vpack.c.b16 %v202, %v188
  %v301 = vpack.c.b16 %v203, %v189
  %v302 = vpack.c.b16 %v204, %v190
  %v303 = vpack.c.b16 %v205, %v191
  %v304 = vpack.c.b16 %v220, %v206
  %v305 = vpack.c.b16 %v221, %v207
  %v306 = vpack.c.b16 %v222, %v208
  %v307 = vpack.c.b16 %v223, %v209
  %v308 = vpack.c.b16 %v224, %v210
  %v309 = vpack.c.b16 %v225, %v211
  %v310 = vpack.c.b16 %v226, %v212
  %v311 = vpack.c.b16 %v227, %v213
  %v312 = vpack.c.b16 %v228, %v214
  %v313 = vpack.c.b16 %v229, %v215
  %v314 = vpack.c.b16 %v230, %v216
  %v315 = vpack.c.b16 %v231, %v217
  %v316 = vpack.c.b16 %v232, %v218
  %v317 = vpack.c.b16 %v233, %v219
  %v318 = vpack.c.b16 %v248, %v234
  %v319 = vpack.c.b16 %v249, %v235
  %v320 = vpack.c.b16 %v250, %v236
  %v321 = vpack.c.b16 %v251, %v237
  %v322 = vpack.c.b16 %v252, %v238
  %v323 = vpack.c.b16 %v253, %v239
  %v324 = vpack.c.b16 %v254, %v240
  %v325 = vpack.c.b16 %v255, %v241
  %v326 = vpack.c.b16 %v256, %v242
  %v327 = vpack.c.b16 %v257, %v243
  %v328 = vpack.c.b16 %v258, %v244
  %v329 = vpack.c.b16 %v259, %v245
  %v330 = vpack.c.b16 %v260, %v246
  %v331 = vpack.c.b16 %v261, %v247
  %v332 = vpack.c.b16 %v262, %v262
  %v333 = vpack.c.b16 %v263, %v263
  %v334 = vpack.c.b16 %v264, %v264
  %v335 = vpack.c.b16 %v265, %v265
  %v336 = vpack.c.b16 %v266, %v266
  %v337 = vpack.c.b16 %v267, %v267
  %v338 = vpack.c.b16 %v268, %v268
  %v339 = vpack.c.b16 %v269, %v269
  %v340 = vpack.c.b16 %v270, %v270
  %v341 = vpack.c.b16 %v271, %v271
  %v342 = vpack.c.b16 %v272, %v272
  %v343 = vpack.c.b16 %v273, %v273
  %v344 = vpack.c.b16 %v274, %v274
  %v345 = vpack.c.b16 %v275, %v275
  %vm402 = vcmask 580608
  %v404 = vsel %vm402, %v23, 0
  %vm406 = vcmask 1042432
  %vm407 = vcmask 1043456
  %v408 = vsel %vm406, 4294967295, 65535
  %v409 = vsel %vm407, %v408, 0
  %v411 = vand.u32 %v332, %v409
  %v414 = vand.u32 %v333, %v409
  %v417 = vand.u32 %v334, %v409
  %v420 = vand.u32 %v335, %v409
  %v423 = vand.u32 %v336, %v409
  %v426 = vand.u32 %v337, %v409
  %v429 = vand.u32 %v338, %v409
  %v432 = vand.u32 %v339, %v409
  %v435 = vand.u32 %v340, %v409
  %v438 = vand.u32 %v341, %v409
  %v441 = vand.u32 %v342, %v409
  %v444 = vand.u32 %v343, %v409
  %v447 = vand.u32 %v344, %v409
  %v450 = vand.u32 %v345, %v409
  %452 = vmatpush.bf16.msra.mxu0 0
  %453 = vmatpush.bf16.msra.mxu0 0
  %454 = vmatpush.bf16.msra.mxu0 0
  %455 = vmatpush.bf16.msra.mxu0 %v411
  %456 = vmatpush.bf16.msra.mxu0 %v318
  %457 = vmatpush.bf16.msra.mxu0 %v304
  %458 = vmatpush.bf16.msra.mxu0 %v290
  %459 = vmatpush.bf16.msra.mxu0 %v276
  %460 = vmatmul.bf16.gmra.mxu0 %v404
  %v461 = vpop.f32.mrf.mxu0
  %v462 = vadd.f32 0.0, %v461
  %v463 = vpop.f32.mrf.mxu0
  %464 = vdwg.mxu0
  %465 = vmatpush.bf16.msra.mxu0 0
  %466 = vmatpush.bf16.msra.mxu0 0
  %467 = vmatpush.bf16.msra.mxu0 0
  %468 = vmatpush.bf16.msra.mxu0 %v414
  %469 = vmatpush.bf16.msra.mxu0 %v319
  %470 = vmatpush.bf16.msra.mxu0 %v305
  %471 = vmatpush.bf16.msra.mxu0 %v291
  %472 = vmatpush.bf16.msra.mxu0 %v277
  %473 = vmatmul.bf16.gmra.mxu0 %v404
  %v474 = vpop.f32.mrf.mxu0
  %v475 = vadd.f32 0.0, %v474
  %v476 = vpop.f32.mrf.mxu0
  %477 = vdwg.mxu0
  %478 = vmatpush.bf16.msra.mxu0 0
  %479 = vmatpush.bf16.msra.mxu0 0
  %480 = vmatpush.bf16.msra.mxu0 0
  %481 = vmatpush.bf16.msra.mxu0 %v417
  %482 = vmatpush.bf16.msra.mxu0 %v320
  %483 = vmatpush.bf16.msra.mxu0 %v306
  %484 = vmatpush.bf16.msra.mxu0 %v292
  %485 = vmatpush.bf16.msra.mxu0 %v278
  %486 = vmatmul.bf16.gmra.mxu0 %v404
  %v487 = vpop.f32.mrf.mxu0
  %v488 = vadd.f32 0.0, %v487
  %v489 = vpop.f32.mrf.mxu0
  %490 = vdwg.mxu0
  %491 = vmatpush.bf16.msra.mxu0 0
  %492 = vmatpush.bf16.msra.mxu0 0
  %493 = vmatpush.bf16.msra.mxu0 0
  %494 = vmatpush.bf16.msra.mxu0 %v420
  %495 = vmatpush.bf16.msra.mxu0 %v321
  %496 = vmatpush.bf16.msra.mxu0 %v307
  %497 = vmatpush.bf16.msra.mxu0 %v293
  %498 = vmatpush.bf16.msra.mxu0 %v279
  %499 = vmatmul.bf16.gmra.mxu0 %v404
  %v500 = vpop.f32.mrf.mxu0
  %v501 = vadd.f32 0.0, %v500
  %v502 = vpop.f32.mrf.mxu0
  %503 = vdwg.mxu0
  %504 = vmatpush.bf16.msra.mxu0 0
  %505 = vmatpush.bf16.msra.mxu0 0
  %506 = vmatpush.bf16.msra.mxu0 0
  %507 = vmatpush.bf16.msra.mxu0 %v423
  %508 = vmatpush.bf16.msra.mxu0 %v322
  %509 = vmatpush.bf16.msra.mxu0 %v308
  %510 = vmatpush.bf16.msra.mxu0 %v294
  %511 = vmatpush.bf16.msra.mxu0 %v280
  %512 = vmatmul.bf16.gmra.mxu0 %v404
  %v513 = vpop.f32.mrf.mxu0
  %v514 = vadd.f32 0.0, %v513
  %v515 = vpop.f32.mrf.mxu0
  %516 = vdwg.mxu0
  %517 = vmatpush.bf16.msra.mxu0 0
  %518 = vmatpush.bf16.msra.mxu0 0
  %519 = vmatpush.bf16.msra.mxu0 0
  %520 = vmatpush.bf16.msra.mxu0 %v426
  %521 = vmatpush.bf16.msra.mxu0 %v323
  %522 = vmatpush.bf16.msra.mxu0 %v309
  %523 = vmatpush.bf16.msra.mxu0 %v295
  %524 = vmatpush.bf16.msra.mxu0 %v281
  %525 = vmatmul.bf16.gmra.mxu0 %v404
  %v526 = vpop.f32.mrf.mxu0
  %v527 = vadd.f32 0.0, %v526
  %v528 = vpop.f32.mrf.mxu0
  %529 = vdwg.mxu0
  %530 = vmatpush.bf16.msra.mxu0 0
  %531 = vmatpush.bf16.msra.mxu0 0
  %532 = vmatpush.bf16.msra.mxu0 0
  %533 = vmatpush.bf16.msra.mxu0 %v429
  %534 = vmatpush.bf16.msra.mxu0 %v324
  %535 = vmatpush.bf16.msra.mxu0 %v310
  %536 = vmatpush.bf16.msra.mxu0 %v296
  %537 = vmatpush.bf16.msra.mxu0 %v282
  %538 = vmatmul.bf16.gmra.mxu0 %v404
  %v539 = vpop.f32.mrf.mxu0
  %v540 = vadd.f32 0.0, %v539
  %v541 = vpop.f32.mrf.mxu0
  %542 = vdwg.mxu0
  %543 = vmatpush.bf16.msra.mxu0 0
  %544 = vmatpush.bf16.msra.mxu0 0
  %545 = vmatpush.bf16.msra.mxu0 0
  %546 = vmatpush.bf16.msra.mxu0 %v432
  %547 = vmatpush.bf16.msra.mxu0 %v325
  %548 = vmatpush.bf16.msra.mxu0 %v311
  %549 = vmatpush.bf16.msra.mxu0 %v297
  %550 = vmatpush.bf16.msra.mxu0 %v283
  %551 = vmatmul.bf16.gmra.mxu0 %v404
  %v552 = vpop.f32.mrf.mxu0
  %v553 = vadd.f32 0.0, %v552
  %v554 = vpop.f32.mrf.mxu0
  %555 = vdwg.mxu0
  %556 = vmatpush.bf16.msra.mxu0 0
  %557 = vmatpush.bf16.msra.mxu0 0
  %558 = vmatpush.bf16.msra.mxu0 0
  %559 = vmatpush.bf16.msra.mxu0 %v435
  %560 = vmatpush.bf16.msra.mxu0 %v326
  %561 = vmatpush.bf16.msra.mxu0 %v312
  %562 = vmatpush.bf16.msra.mxu0 %v298
  %563 = vmatpush.bf16.msra.mxu0 %v284
  %564 = vmatmul.bf16.gmra.mxu0 %v404
  %v565 = vpop.f32.mrf.mxu0
  %v566 = vadd.f32 0.0, %v565
  %v567 = vpop.f32.mrf.mxu0
  %568 = vdwg.mxu0
  %569 = vmatpush.bf16.msra.mxu0 0
  %570 = vmatpush.bf16.msra.mxu0 0
  %571 = vmatpush.bf16.msra.mxu0 0
  %572 = vmatpush.bf16.msra.mxu0 %v438
  %573 = vmatpush.bf16.msra.mxu0 %v327
  %574 = vmatpush.bf16.msra.mxu0 %v313
  %575 = vmatpush.bf16.msra.mxu0 %v299
  %576 = vmatpush.bf16.msra.mxu0 %v285
  %577 = vmatmul.bf16.gmra.mxu0 %v404
  %v578 = vpop.f32.mrf.mxu0
  %v579 = vadd.f32 0.0, %v578
  %v580 = vpop.f32.mrf.mxu0
  %581 = vdwg.mxu0
  %582 = vmatpush.bf16.msra.mxu0 0
  %583 = vmatpush.bf16.msra.mxu0 0
  %584 = vmatpush.bf16.msra.mxu0 0
  %585 = vmatpush.bf16.msra.mxu0 %v441
  %586 = vmatpush.bf16.msra.mxu0 %v328
  %587 = vmatpush.bf16.msra.mxu0 %v314
  %588 = vmatpush.bf16.msra.mxu0 %v300
  %589 = vmatpush.bf16.msra.mxu0 %v286
  %590 = vmatmul.bf16.gmra.mxu0 %v404
  %v591 = vpop.f32.mrf.mxu0
  %v592 = vadd.f32 0.0, %v591
  %v593 = vpop.f32.mrf.mxu0
  %594 = vdwg.mxu0
  %595 = vmatpush.bf16.msra.mxu0 0
  %596 = vmatpush.bf16.msra.mxu0 0
  %597 = vmatpush.bf16.msra.mxu0 0
  %598 = vmatpush.bf16.msra.mxu0 %v444
  %599 = vmatpush.bf16.msra.mxu0 %v329
  %600 = vmatpush.bf16.msra.mxu0 %v315
  %601 = vmatpush.bf16.msra.mxu0 %v301
  %602 = vmatpush.bf16.msra.mxu0 %v287
  %603 = vmatmul.bf16.gmra.mxu0 %v404
  %v604 = vpop.f32.mrf.mxu0
  %v605 = vadd.f32 0.0, %v604
  %v606 = vpop.f32.mrf.mxu0
  %607 = vdwg.mxu0
  %608 = vmatpush.bf16.msra.mxu0 0
  %609 = vmatpush.bf16.msra.mxu0 0
  %610 = vmatpush.bf16.msra.mxu0 0
  %611 = vmatpush.bf16.msra.mxu0 %v447
  %612 = vmatpush.bf16.msra.mxu0 %v330
  %613 = vmatpush.bf16.msra.mxu0 %v316
  %614 = vmatpush.bf16.msra.mxu0 %v302
  %615 = vmatpush.bf16.msra.mxu0 %v288
  %616 = vmatmul.bf16.gmra.mxu0 %v404
  %v617 = vpop.f32.mrf.mxu0
  %v618 = vadd.f32 0.0, %v617
  %v619 = vpop.f32.mrf.mxu0
  %620 = vdwg.mxu0
  %621 = vmatpush.bf16.msra.mxu0 0
  %622 = vmatpush.bf16.msra.mxu0 0
  %623 = vmatpush.bf16.msra.mxu0 0
  %624 = vmatpush.bf16.msra.mxu0 %v450
  %625 = vmatpush.bf16.msra.mxu0 %v331
  %626 = vmatpush.bf16.msra.mxu0 %v317
  %627 = vmatpush.bf16.msra.mxu0 %v303
  %628 = vmatpush.bf16.msra.mxu0 %v289
  %629 = vmatmul.bf16.gmra.mxu0 %v404
  %v630 = vpop.f32.mrf.mxu0
  %v631 = vadd.f32 0.0, %v630
  %v632 = vpop.f32.mrf.mxu0
  %633 = vdwg.mxu0
  %v634 = vld [vmem:[%s1] sm:$0xff]
  %v635 = vld [vmem:[%s1 + $0x8] sm:$0x3f]
  %v638 = vperm.slane %v634, 0
  %v639 = vperm.slane %v634, 1
  %v640 = vperm.slane %v634, 2
  %v641 = vperm.slane %v634, 3
  %v642 = vperm.slane %v634, 4
  %v643 = vperm.slane %v634, 5
  %v644 = vperm.slane %v634, 6
  %v645 = vperm.slane %v634, 7
  %v646 = vperm.slane %v635, 0
  %v647 = vperm.slane %v635, 1
  %v648 = vperm.slane %v635, 2
  %v649 = vperm.slane %v635, 3
  %v650 = vperm.slane %v635, 4
  %v651 = vperm.slane %v635, 5
  %vm666 = vcmp.eq.f32.partialorder %v462, %v638
  %vm667 = vcmp.eq.f32.partialorder %v475, %v639
  %vm668 = vcmp.eq.f32.partialorder %v488, %v640
  %vm669 = vcmp.eq.f32.partialorder %v501, %v641
  %vm670 = vcmp.eq.f32.partialorder %v514, %v642
  %vm671 = vcmp.eq.f32.partialorder %v527, %v643
  %vm672 = vcmp.eq.f32.partialorder %v540, %v644
  %vm673 = vcmp.eq.f32.partialorder %v553, %v645
  %vm674 = vcmp.eq.f32.partialorder %v566, %v646
  %vm675 = vcmp.eq.f32.partialorder %v579, %v647
  %vm676 = vcmp.eq.f32.partialorder %v592, %v648
  %vm677 = vcmp.eq.f32.partialorder %v605, %v649
  %vm678 = vcmp.eq.f32.partialorder %v618, %v650
  %vm679 = vcmp.eq.f32.partialorder %v631, %v651
  %v680 = vsel %vm666, 1, 0
  %v681 = vsel %vm667, 1, 0
  %v682 = vsel %vm668, 1, 0
  %v683 = vsel %vm669, 1, 0
  %v684 = vsel %vm670, 1, 0
  %v685 = vsel %vm671, 1, 0
  %v686 = vsel %vm672, 1, 0
  %v687 = vsel %vm673, 1, 0
  %v688 = vsel %vm674, 1, 0
  %v689 = vsel %vm675, 1, 0
  %v690 = vsel %vm676, 1, 0
  %v691 = vsel %vm677, 1, 0
  %v692 = vsel %vm678, 1, 0
  %v693 = vsel %vm679, 1, 0
  %v694 = vcvt.s32.f32 %v680
  %v695 = vcvt.s32.f32 %v681
  %v696 = vcvt.s32.f32 %v682
  %v697 = vcvt.s32.f32 %v683
  %v698 = vcvt.s32.f32 %v684
  %v699 = vcvt.s32.f32 %v685
  %v700 = vcvt.s32.f32 %v686
  %v701 = vcvt.s32.f32 %v687
  %v702 = vcvt.s32.f32 %v688
  %v703 = vcvt.s32.f32 %v689
  %v704 = vcvt.s32.f32 %v690
  %v705 = vcvt.s32.f32 %v691
  %v706 = vcvt.s32.f32 %v692
  %v707 = vcvt.s32.f32 %v693
  %v708 = vpack.c.bf16 %v694, %v694
  %v709 = vpack.c.bf16 %v695, %v695
  %v710 = vpack.c.bf16 %v696, %v696
  %v711 = vpack.c.bf16 %v697, %v697
  %v712 = vpack.c.bf16 %v698, %v698
  %v713 = vpack.c.bf16 %v699, %v699
  %v714 = vpack.c.bf16 %v700, %v700
  %v715 = vpack.c.bf16 %v701, %v701
  %v716 = vpack.c.bf16 %v702, %v702
  %v717 = vpack.c.bf16 %v703, %v703
  %v718 = vpack.c.bf16 %v704, %v704
  %v719 = vpack.c.bf16 %v705, %v705
  %v720 = vpack.c.bf16 %v706, %v706
  %v721 = vpack.c.bf16 %v707, %v707
  %v722 = vld [vmem:[%s3] sm:$0xf]
  %v723 = vld [vmem:[%s3 + $0x4] sm:$0xf]
  %v724 = vld [vmem:[%s3 + $0x8] sm:$0xf]
  %v725 = vld [vmem:[%s3 + $0xc] sm:$0xf]
  %v726 = vld [vmem:[%s3 + $0x10] sm:$0xf]
  %v727 = vld [vmem:[%s3 + $0x14] sm:$0xf]
  %v728 = vld [vmem:[%s3 + $0x18] sm:$0xf]
  %v729 = vld [vmem:[%s3 + $0x1c] sm:$0xf]
  %v730 = vld [vmem:[%s3 + $0x20] sm:$0xf]
  %v731 = vld [vmem:[%s3 + $0x24] sm:$0xf]
  %v732 = vld [vmem:[%s3 + $0x28] sm:$0xf]
  %v733 = vld [vmem:[%s3 + $0x2c] sm:$0xf]
  %v734 = vld [vmem:[%s3 + $0x30] sm:$0xf]
  %v735 = vld [vmem:[%s3 + $0x34] sm:$0xf]
  %v736 = vld [vmem:[%s3 + $0x38] sm:$0xf]
  %v737 = vld [vmem:[%s3 + $0x3c] sm:$0xf]
  %v738 = vld [vmem:[%s3 + $0x40] sm:$0xf]
  %v739 = vld [vmem:[%s3 + $0x44] sm:$0xf]
  %v740 = vld [vmem:[%s3 + $0x48] sm:$0xf]
  %v741 = vld [vmem:[%s3 + $0x4c] sm:$0xf]
  %v742 = vld [vmem:[%s3 + $0x50] sm:$0xf]
  %v743 = vld [vmem:[%s3 + $0x54] sm:$0xf]
  %v744 = vld [vmem:[%s3 + $0x58] sm:$0xf]
  %v745 = vld [vmem:[%s3 + $0x5c] sm:$0xf]
  %v746 = vld [vmem:[%s3 + $0x60] sm:$0xf]
  %v747 = vld [vmem:[%s3 + $0x64] sm:$0xf]
  %v748 = vld [vmem:[%s3 + $0x68] sm:$0xf]
  %v749 = vld [vmem:[%s3 + $0x6c] sm:$0xf]
  %v750 = vld [vmem:[%s3 + $0x70] sm:$0xf]
  %v751 = vld [vmem:[%s3 + $0x74] sm:$0xf]
  %v752 = vld [vmem:[%s3 + $0x78] sm:$0xf]
  %v753 = vld [vmem:[%s3 + $0x7c] sm:$0xf]
  %v754 = vld [vmem:[%s3 + $0x80] sm:$0xf]
  %v755 = vld [vmem:[%s3 + $0x84] sm:$0xf]
  %v756 = vld [vmem:[%s3 + $0x88] sm:$0xf]
  %v757 = vld [vmem:[%s3 + $0x8c] sm:$0xf]
  %v758 = vld [vmem:[%s3 + $0x90] sm:$0xf]
  %v759 = vld [vmem:[%s3 + $0x94] sm:$0xf]
  %v760 = vld [vmem:[%s3 + $0x98] sm:$0xf]
  %v761 = vld [vmem:[%s3 + $0x9c] sm:$0xf]
  %v762 = vld [vmem:[%s3 + $0xa0] sm:$0xf]
  %v763 = vld [vmem:[%s3 + $0xa4] sm:$0xf]
  %v764 = vld [vmem:[%s3 + $0xa8] sm:$0xf]
  %v765 = vld [vmem:[%s3 + $0xac] sm:$0xf]
  %v766 = vld [vmem:[%s3 + $0xb0] sm:$0xf]
  %v767 = vld [vmem:[%s3 + $0xb4] sm:$0xf]
  %v768 = vld [vmem:[%s3 + $0xb8] sm:$0xf]
  %v769 = vld [vmem:[%s3 + $0xbc] sm:$0xf]
  %v770 = vld [vmem:[%s3 + $0xc0] sm:$0xf]
  %v771 = vld [vmem:[%s3 + $0xc4] sm:$0xf]
  %v772 = vld [vmem:[%s3 + $0xc8] sm:$0xf]
  %v773 = vld [vmem:[%s3 + $0xcc] sm:$0xf]
  %v774 = vld [vmem:[%s3 + $0xd0] sm:$0xf]
  %v775 = vld [vmem:[%s3 + $0xd4] sm:$0xf]
  %v776 = vld [vmem:[%s3 + $0xd8] sm:$0xf]
  %v777 = vld [vmem:[%s3 + $0xdc] sm:$0xf]
  %v778 = vld [vmem:[%s3 + $0xe0] sm:$0xf]
  %v779 = vld [vmem:[%s3 + $0xe4] sm:$0xf]
  %v780 = vld [vmem:[%s3 + $0xe8] sm:$0xf]
  %v781 = vld [vmem:[%s3 + $0xec] sm:$0xf]
  %v782 = vld [vmem:[%s3 + $0xf0] sm:$0xf]
  %v783 = vld [vmem:[%s3 + $0xf4] sm:$0xf]
  %v784 = vld [vmem:[%s3 + $0xf8] sm:$0xf]
  %v785 = vld [vmem:[%s3 + $0xfc] sm:$0xf]
  %v786 = vld [vmem:[%s3 + $0x100] sm:$0xf]
  %v787 = vld [vmem:[%s3 + $0x104] sm:$0xf]
  %v788 = vld [vmem:[%s3 + $0x108] sm:$0xf]
  %v789 = vld [vmem:[%s3 + $0x10c] sm:$0xf]
  %v790 = vld [vmem:[%s3 + $0x110] sm:$0xf]
  %v791 = vld [vmem:[%s3 + $0x114] sm:$0xf]
  %v792 = vld [vmem:[%s3 + $0x118] sm:$0xf]
  %v793 = vld [vmem:[%s3 + $0x11c] sm:$0xf]
  %v794 = vld [vmem:[%s3 + $0x120] sm:$0xf]
  %v795 = vld [vmem:[%s3 + $0x124] sm:$0xf]
  %v796 = vld [vmem:[%s3 + $0x128] sm:$0xf]
  %v797 = vld [vmem:[%s3 + $0x12c] sm:$0xf]
  %v798 = vld [vmem:[%s3 + $0x130] sm:$0xf]
  %v799 = vld [vmem:[%s3 + $0x134] sm:$0xf]
  %v800 = vld [vmem:[%s3 + $0x138] sm:$0xf]
  %v801 = vld [vmem:[%s3 + $0x13c] sm:$0xf]
  %v802 = vld [vmem:[%s3 + $0x140] sm:$0xf]
  %v803 = vld [vmem:[%s3 + $0x144] sm:$0xf]
  %v804 = vld [vmem:[%s3 + $0x148] sm:$0xf]
  %v805 = vld [vmem:[%s3 + $0x14c] sm:$0xf]
  %v806 = vld [vmem:[%s3 + $0x150] sm:$0xf]
  %v807 = vld [vmem:[%s3 + $0x154] sm:$0xf]
  %v808 = vld [vmem:[%s3 + $0x158] sm:$0xf]
  %v809 = vld [vmem:[%s3 + $0x15c] sm:$0xf]
  %v810 = vld [vmem:[%s3 + $0x160] sm:$0xf]
  %v811 = vld [vmem:[%s3 + $0x164] sm:$0xf]
  %v812 = vld [vmem:[%s3 + $0x168] sm:$0xf]
  %v813 = vld [vmem:[%s3 + $0x16c] sm:$0xf]
  %v814 = vld [vmem:[%s3 + $0x170] sm:$0xf]
  %v815 = vld [vmem:[%s3 + $0x174] sm:$0xf]
  %v816 = vld [vmem:[%s3 + $0x178] sm:$0xf]
  %v817 = vld [vmem:[%s3 + $0x17c] sm:$0xf]
  %v818 = vld [vmem:[%s3 + $0x180] sm:$0xf]
  %v819 = vld [vmem:[%s3 + $0x184] sm:$0xf]
  %v820 = vld [vmem:[%s3 + $0x188] sm:$0xf]
  %v821 = vld [vmem:[%s3 + $0x18c] sm:$0xf]
  %v822 = vld [vmem:[%s3 + $0x190] sm:$0xf]
  %v823 = vld [vmem:[%s3 + $0x194] sm:$0xf]
  %v824 = vld [vmem:[%s3 + $0x198] sm:$0xf]
  %v825 = vld [vmem:[%s3 + $0x19c] sm:$0xf]
  %v826 = vld [vmem:[%s3 + $0x1a0] sm:$0xf]
  %v827 = vld [vmem:[%s3 + $0x1a4] sm:$0xf]
  %v828 = vld [vmem:[%s3 + $0x1a8] sm:$0xf]
  %v829 = vld [vmem:[%s3 + $0x1ac] sm:$0xf]
  %v830 = vld [vmem:[%s3 + $0x1b0] sm:$0xf]
  %v831 = vld [vmem:[%s3 + $0x1b4] sm:$0xf]
  %v832 = vld [vmem:[%s3 + $0x1b8] sm:$0xf]
  %v833 = vld [vmem:[%s3 + $0x1bc] sm:$0xf]
  %v834 = vld [vmem:[%s3 + $0x1c0] sm:$0xf]
  %v835 = vld [vmem:[%s3 + $0x1c4] sm:$0xf]
  %v836 = vld [vmem:[%s3 + $0x1c8] sm:$0xf]
  %v837 = vld [vmem:[%s3 + $0x1cc] sm:$0xf]
  %v838 = vld [vmem:[%s3 + $0x1d0] sm:$0xf]
  %v839 = vld [vmem:[%s3 + $0x1d4] sm:$0xf]
  %v840 = vld [vmem:[%s3 + $0x1d8] sm:$0xf]
  %v841 = vld [vmem:[%s3 + $0x1dc] sm:$0xf]
  %v842 = vld [vmem:[%s3 + $0x1e0] sm:$0xf]
  %v843 = vld [vmem:[%s3 + $0x1e4] sm:$0xf]
  %v844 = vld [vmem:[%s3 + $0x1e8] sm:$0xf]
  %v845 = vld [vmem:[%s3 + $0x1ec] sm:$0xf]
  %v846 = vld [vmem:[%s3 + $0x1f0] sm:$0xf]
  %v847 = vld [vmem:[%s3 + $0x1f4] sm:$0xf]
  %v848 = vld [vmem:[%s3 + $0x1f8] sm:$0xf]
  %v849 = vld [vmem:[%s3 + $0x1fc] sm:$0xf]
  %v850 = vld [vmem:[%s3 + $0x200] sm:$0xf]
  %v851 = vld [vmem:[%s3 + $0x204] sm:$0xf]
  %v852 = vld [vmem:[%s3 + $0x208] sm:$0xf]
  %v853 = vld [vmem:[%s3 + $0x20c] sm:$0xf]
  %v854 = vld [vmem:[%s3 + $0x210] sm:$0xf]
  %v855 = vld [vmem:[%s3 + $0x214] sm:$0xf]
  %v856 = vld [vmem:[%s3 + $0x218] sm:$0xf]
  %v857 = vld [vmem:[%s3 + $0x21c] sm:$0xf]
  %v858 = vld [vmem:[%s3 + $0x220] sm:$0xf]
  %v859 = vld [vmem:[%s3 + $0x224] sm:$0xf]
  %v860 = vld [vmem:[%s3 + $0x228] sm:$0xf]
  %v861 = vld [vmem:[%s3 + $0x22c] sm:$0xf]
  %v862 = vld [vmem:[%s3 + $0x230] sm:$0xf]
  %v863 = vld [vmem:[%s3 + $0x234] sm:$0xf]
  %v864 = vld [vmem:[%s3 + $0x238] sm:$0xf]
  %v865 = vld [vmem:[%s3 + $0x23c] sm:$0xf]
  %v866 = vld [vmem:[%s3 + $0x240] sm:$0xf]
  %v867 = vld [vmem:[%s3 + $0x244] sm:$0xf]
  %v868 = vld [vmem:[%s3 + $0x248] sm:$0xf]
  %v869 = vld [vmem:[%s3 + $0x24c] sm:$0xf]
  %v870 = vld [vmem:[%s3 + $0x250] sm:$0xf]
  %v871 = vld [vmem:[%s3 + $0x254] sm:$0xf]
  %v872 = vld [vmem:[%s3 + $0x258] sm:$0xf]
  %v873 = vld [vmem:[%s3 + $0x25c] sm:$0xf]
  %v874 = vld [vmem:[%s3 + $0x260] sm:$0xf]
  %v875 = vld [vmem:[%s3 + $0x264] sm:$0xf]
  %v876 = vld [vmem:[%s3 + $0x268] sm:$0xf]
  %v877 = vld [vmem:[%s3 + $0x26c] sm:$0xf]
  %v878 = vld [vmem:[%s3 + $0x270] sm:$0xf]
  %v879 = vld [vmem:[%s3 + $0x274] sm:$0xf]
  %v880 = vld [vmem:[%s3 + $0x278] sm:$0xf]
  %v881 = vld [vmem:[%s3 + $0x27c] sm:$0xf]
  %v882 = vld [vmem:[%s3 + $0x280] sm:$0xf]
  %v883 = vld [vmem:[%s3 + $0x284] sm:$0xf]
  %v884 = vld [vmem:[%s3 + $0x288] sm:$0xf]
  %v885 = vld [vmem:[%s3 + $0x28c] sm:$0xf]
  %v886 = vld [vmem:[%s3 + $0x290] sm:$0xf]
  %v887 = vld [vmem:[%s3 + $0x294] sm:$0xf]
  %v888 = vld [vmem:[%s3 + $0x298] sm:$0xf]
  %v889 = vld [vmem:[%s3 + $0x29c] sm:$0xf]
  %v890 = vld [vmem:[%s3 + $0x2a0] sm:$0xf]
  %v891 = vld [vmem:[%s3 + $0x2a4] sm:$0xf]
  %v892 = vld [vmem:[%s3 + $0x2a8] sm:$0xf]
  %v893 = vld [vmem:[%s3 + $0x2ac] sm:$0xf]
  %v894 = vld [vmem:[%s3 + $0x2b0] sm:$0xf]
  %v895 = vld [vmem:[%s3 + $0x2b4] sm:$0xf]
  %v896 = vld [vmem:[%s3 + $0x2b8] sm:$0xf]
  %v897 = vld [vmem:[%s3 + $0x2bc] sm:$0xf]
  %v898 = vld [vmem:[%s3 + $0x2c0] sm:$0xf]
  %v899 = vld [vmem:[%s3 + $0x2c4] sm:$0xf]
  %v900 = vld [vmem:[%s3 + $0x2c8] sm:$0xf]
  %v901 = vld [vmem:[%s3 + $0x2cc] sm:$0xf]
  %v902 = vld [vmem:[%s3 + $0x2d0] sm:$0xf]
  %v903 = vld [vmem:[%s3 + $0x2d4] sm:$0xf]
  %v904 = vld [vmem:[%s3 + $0x2d8] sm:$0xf]
  %v905 = vld [vmem:[%s3 + $0x2dc] sm:$0xf]
  %v906 = vld [vmem:[%s3 + $0x2e0] sm:$0xf]
  %v907 = vld [vmem:[%s3 + $0x2e4] sm:$0xf]
  %v908 = vld [vmem:[%s3 + $0x2e8] sm:$0xf]
  %v909 = vld [vmem:[%s3 + $0x2ec] sm:$0xf]
  %v910 = vld [vmem:[%s3 + $0x2f0] sm:$0xf]
  %v911 = vld [vmem:[%s3 + $0x2f4] sm:$0xf]
  %v912 = vld [vmem:[%s3 + $0x2f8] sm:$0xf]
  %v913 = vld [vmem:[%s3 + $0x2fc] sm:$0xf]
  %v914 = vld [vmem:[%s3 + $0x300] sm:$0xf]
  %v915 = vld [vmem:[%s3 + $0x304] sm:$0xf]
  %v916 = vld [vmem:[%s3 + $0x308] sm:$0xf]
  %v917 = vld [vmem:[%s3 + $0x30c] sm:$0xf]
  %v918 = vld [vmem:[%s3 + $0x310] sm:$0xf]
  %v919 = vld [vmem:[%s3 + $0x314] sm:$0xf]
  %v920 = vld [vmem:[%s3 + $0x318] sm:$0xf]
  %v921 = vld [vmem:[%s3 + $0x31c] sm:$0xf]
  %v922 = vld [vmem:[%s3 + $0x320] sm:$0xf]
  %v923 = vld [vmem:[%s3 + $0x324] sm:$0xf]
  %v924 = vld [vmem:[%s3 + $0x328] sm:$0xf]
  %v925 = vld [vmem:[%s3 + $0x32c] sm:$0xf]
  %v926 = vld [vmem:[%s3 + $0x330] sm:$0xf]
  %v927 = vld [vmem:[%s3 + $0x334] sm:$0xf]
  %v928 = vld [vmem:[%s3 + $0x338] sm:$0xf]
  %v929 = vld [vmem:[%s3 + $0x33c] sm:$0xf]
  %v930 = vld [vmem:[%s3 + $0x340] sm:$0xf]
  %v931 = vld [vmem:[%s3 + $0x344] sm:$0xf]
  %v932 = vld [vmem:[%s3 + $0x348] sm:$0xf]
  %v933 = vld [vmem:[%s3 + $0x34c] sm:$0xf]
  %v934 = vld [vmem:[%s3 + $0x350] sm:$0xf]
  %v935 = vld [vmem:[%s3 + $0x354] sm:$0xf]
  %v936 = vld [vmem:[%s3 + $0x358] sm:$0xf]
  %v937 = vld [vmem:[%s3 + $0x35c] sm:$0xf]
  %v938 = vld [vmem:[%s3 + $0x360] sm:$0xf]
  %v939 = vld [vmem:[%s3 + $0x364] sm:$0xf]
  %v940 = vld [vmem:[%s3 + $0x368] sm:$0xf]
  %v941 = vld [vmem:[%s3 + $0x36c] sm:$0xf]
  %v942 = vld [vmem:[%s3 + $0x370] sm:$0xf]
  %v943 = vld [vmem:[%s3 + $0x374] sm:$0xf]
  %v944 = vld [vmem:[%s3 + $0x378] sm:$0xf]
  %v945 = vld [vmem:[%s3 + $0x37c] sm:$0xf]
  %v946 = vld [vmem:[%s4] sm:$0x1]
  %v948 = vperm.slane %v946, 0
  %v1174 = vunpack.c.l.b16 %v722
  %v1175 = vunpack.c.l.b16 %v723
  %v1176 = vunpack.c.l.b16 %v724
  %v1177 = vunpack.c.l.b16 %v725
  %v1178 = vunpack.c.l.b16 %v726
  %v1179 = vunpack.c.l.b16 %v727
  %v1180 = vunpack.c.l.b16 %v728
  %v1181 = vunpack.c.l.b16 %v729
  %v1182 = vunpack.c.l.b16 %v730
  %v1183 = vunpack.c.l.b16 %v731
  %v1184 = vunpack.c.l.b16 %v732
  %v1185 = vunpack.c.l.b16 %v733
  %v1186 = vunpack.c.l.b16 %v734
  %v1187 = vunpack.c.l.b16 %v735
  %v1188 = vunpack.c.l.b16 %v736
  %v1189 = vunpack.c.l.b16 %v737
  %v1190 = vunpack.c.l.b16 %v738
  %v1191 = vunpack.c.l.b16 %v739
  %v1192 = vunpack.c.l.b16 %v740
  %v1193 = vunpack.c.l.b16 %v741
  %v1194 = vunpack.c.l.b16 %v742
  %v1195 = vunpack.c.l.b16 %v743
  %v1196 = vunpack.c.l.b16 %v744
  %v1197 = vunpack.c.l.b16 %v745
  %v1198 = vunpack.c.l.b16 %v746
  %v1199 = vunpack.c.l.b16 %v747
  %v1200 = vunpack.c.l.b16 %v748
  %v1201 = vunpack.c.l.b16 %v749
  %v1202 = vunpack.c.l.b16 %v750
  %v1203 = vunpack.c.l.b16 %v751
  %v1204 = vunpack.c.l.b16 %v752
  %v1205 = vunpack.c.l.b16 %v753
  %v1206 = vunpack.c.l.b16 %v754
  %v1207 = vunpack.c.l.b16 %v755
  %v1208 = vunpack.c.l.b16 %v756
  %v1209 = vunpack.c.l.b16 %v757
  %v1210 = vunpack.c.l.b16 %v758
  %v1211 = vunpack.c.l.b16 %v759
  %v1212 = vunpack.c.l.b16 %v760
  %v1213 = vunpack.c.l.b16 %v761
  %v1214 = vunpack.c.l.b16 %v762
  %v1215 = vunpack.c.l.b16 %v763
  %v1216 = vunpack.c.l.b16 %v764
  %v1217 = vunpack.c.l.b16 %v765
  %v1218 = vunpack.c.l.b16 %v766
  %v1219 = vunpack.c.l.b16 %v767
  %v1220 = vunpack.c.l.b16 %v768
  %v1221 = vunpack.c.l.b16 %v769
  %v1222 = vunpack.c.l.b16 %v770
  %v1223 = vunpack.c.l.b16 %v771
  %v1224 = vunpack.c.l.b16 %v772
  %v1225 = vunpack.c.l.b16 %v773
  %v1226 = vunpack.c.l.b16 %v774
  %v1227 = vunpack.c.l.b16 %v775
  %v1228 = vunpack.c.l.b16 %v776
  %v1229 = vunpack.c.l.b16 %v777
  %v1230 = vunpack.c.l.b16 %v778
  %v1231 = vunpack.c.l.b16 %v779
  %v1232 = vunpack.c.l.b16 %v780
  %v1233 = vunpack.c.l.b16 %v781
  %v1234 = vunpack.c.l.b16 %v782
  %v1235 = vunpack.c.l.b16 %v783
  %v1236 = vunpack.c.l.b16 %v784
  %v1237 = vunpack.c.l.b16 %v785
  %v1238 = vunpack.c.l.b16 %v786
  %v1239 = vunpack.c.l.b16 %v787
  %v1240 = vunpack.c.l.b16 %v788
  %v1241 = vunpack.c.l.b16 %v789
  %v1242 = vunpack.c.l.b16 %v790
  %v1243 = vunpack.c.l.b16 %v791
  %v1244 = vunpack.c.l.b16 %v792
  %v1245 = vunpack.c.l.b16 %v793
  %v1246 = vunpack.c.l.b16 %v794
  %v1247 = vunpack.c.l.b16 %v795
  %v1248 = vunpack.c.l.b16 %v796
  %v1249 = vunpack.c.l.b16 %v797
  %v1250 = vunpack.c.l.b16 %v798
  %v1251 = vunpack.c.l.b16 %v799
  %v1252 = vunpack.c.l.b16 %v800
  %v1253 = vunpack.c.l.b16 %v801
  %v1254 = vunpack.c.l.b16 %v802
  %v1255 = vunpack.c.l.b16 %v803
  %v1256 = vunpack.c.l.b16 %v804
  %v1257 = vunpack.c.l.b16 %v805
  %v1258 = vunpack.c.l.b16 %v806
  %v1259 = vunpack.c.l.b16 %v807
  %v1260 = vunpack.c.l.b16 %v808
  %v1261 = vunpack.c.l.b16 %v809
  %v1262 = vunpack.c.l.b16 %v810
  %v1263 = vunpack.c.l.b16 %v811
  %v1264 = vunpack.c.l.b16 %v812
  %v1265 = vunpack.c.l.b16 %v813
  %v1266 = vunpack.c.l.b16 %v814
  %v1267 = vunpack.c.l.b16 %v815
  %v1268 = vunpack.c.l.b16 %v816
  %v1269 = vunpack.c.l.b16 %v817
  %v1270 = vunpack.c.l.b16 %v818
  %v1271 = vunpack.c.l.b16 %v819
  %v1272 = vunpack.c.l.b16 %v820
  %v1273 = vunpack.c.l.b16 %v821
  %v1274 = vunpack.c.l.b16 %v822
  %v1275 = vunpack.c.l.b16 %v823
  %v1276 = vunpack.c.l.b16 %v824
  %v1277 = vunpack.c.l.b16 %v825
  %v1278 = vunpack.c.l.b16 %v826
  %v1279 = vunpack.c.l.b16 %v827
  %v1280 = vunpack.c.l.b16 %v828
  %v1281 = vunpack.c.l.b16 %v829
  %v1282 = vunpack.c.l.b16 %v830
  %v1283 = vunpack.c.l.b16 %v831
  %v1284 = vunpack.c.l.b16 %v832
  %v1285 = vunpack.c.l.b16 %v833
  %v1286 = vunpack.c.l.b16 %v834
  %v1287 = vunpack.c.l.b16 %v835
  %v1288 = vunpack.c.l.b16 %v836
  %v1289 = vunpack.c.l.b16 %v837
  %v1290 = vunpack.c.l.b16 %v838
  %v1291 = vunpack.c.l.b16 %v839
  %v1292 = vunpack.c.l.b16 %v840
  %v1293 = vunpack.c.l.b16 %v841
  %v1294 = vunpack.c.l.b16 %v842
  %v1295 = vunpack.c.l.b16 %v843
  %v1296 = vunpack.c.l.b16 %v844
  %v1297 = vunpack.c.l.b16 %v845
  %v1298 = vunpack.c.l.b16 %v846
  %v1299 = vunpack.c.l.b16 %v847
  %v1300 = vunpack.c.l.b16 %v848
  %v1301 = vunpack.c.l.b16 %v849
  %v1302 = vunpack.c.l.b16 %v850
  %v1303 = vunpack.c.l.b16 %v851
  %v1304 = vunpack.c.l.b16 %v852
  %v1305 = vunpack.c.l.b16 %v853
  %v1306 = vunpack.c.l.b16 %v854
  %v1307 = vunpack.c.l.b16 %v855
  %v1308 = vunpack.c.l.b16 %v856
  %v1309 = vunpack.c.l.b16 %v857
  %v1310 = vunpack.c.l.b16 %v858
  %v1311 = vunpack.c.l.b16 %v859
  %v1312 = vunpack.c.l.b16 %v860
  %v1313 = vunpack.c.l.b16 %v861
  %v1314 = vunpack.c.l.b16 %v862
  %v1315 = vunpack.c.l.b16 %v863
  %v1316 = vunpack.c.l.b16 %v864
  %v1317 = vunpack.c.l.b16 %v865
  %v1318 = vunpack.c.l.b16 %v866
  %v1319 = vunpack.c.l.b16 %v867
  %v1320 = vunpack.c.l.b16 %v868
  %v1321 = vunpack.c.l.b16 %v869
  %v1322 = vunpack.c.l.b16 %v870
  %v1323 = vunpack.c.l.b16 %v871
  %v1324 = vunpack.c.l.b16 %v872
  %v1325 = vunpack.c.l.b16 %v873
  %v1326 = vunpack.c.l.b16 %v874
  %v1327 = vunpack.c.l.b16 %v875
  %v1328 = vunpack.c.l.b16 %v876
  %v1329 = vunpack.c.l.b16 %v877
  %v1330 = vunpack.c.l.b16 %v878
  %v1331 = vunpack.c.l.b16 %v879
  %v1332 = vunpack.c.l.b16 %v880
  %v1333 = vunpack.c.l.b16 %v881
  %v1334 = vunpack.c.l.b16 %v882
  %v1335 = vunpack.c.l.b16 %v883
  %v1336 = vunpack.c.l.b16 %v884
  %v1337 = vunpack.c.l.b16 %v885
  %v1338 = vunpack.c.l.b16 %v886
  %v1339 = vunpack.c.l.b16 %v887
  %v1340 = vunpack.c.l.b16 %v888
  %v1341 = vunpack.c.l.b16 %v889
  %v1342 = vunpack.c.l.b16 %v890
  %v1343 = vunpack.c.l.b16 %v891
  %v1344 = vunpack.c.l.b16 %v892
  %v1345 = vunpack.c.l.b16 %v893
  %v1346 = vunpack.c.l.b16 %v894
  %v1347 = vunpack.c.l.b16 %v895
  %v1348 = vunpack.c.l.b16 %v896
  %v1349 = vunpack.c.l.b16 %v897
  %v1350 = vunpack.c.l.b16 %v898
  %v1351 = vunpack.c.l.b16 %v899
  %v1352 = vunpack.c.l.b16 %v900
  %v1353 = vunpack.c.l.b16 %v901
  %v1354 = vunpack.c.l.b16 %v902
  %v1355 = vunpack.c.l.b16 %v903
  %v1356 = vunpack.c.l.b16 %v904
  %v1357 = vunpack.c.l.b16 %v905
  %v1358 = vunpack.c.l.b16 %v906
  %v1359 = vunpack.c.l.b16 %v907
  %v1360 = vunpack.c.l.b16 %v908
  %v1361 = vunpack.c.l.b16 %v909
  %v1362 = vunpack.c.l.b16 %v910
  %v1363 = vunpack.c.l.b16 %v911
  %v1364 = vunpack.c.l.b16 %v912
  %v1365 = vunpack.c.l.b16 %v913
  %v1366 = vunpack.c.l.b16 %v914
  %v1367 = vunpack.c.l.b16 %v915
  %v1368 = vunpack.c.l.b16 %v916
  %v1369 = vunpack.c.l.b16 %v917
  %v1370 = vunpack.c.l.b16 %v918
  %v1371 = vunpack.c.l.b16 %v919
  %v1372 = vunpack.c.l.b16 %v920
  %v1373 = vunpack.c.l.b16 %v921
  %v1374 = vunpack.c.l.b16 %v922
  %v1375 = vunpack.c.l.b16 %v923
  %v1376 = vunpack.c.l.b16 %v924
  %v1377 = vunpack.c.l.b16 %v925
  %v1378 = vunpack.c.l.b16 %v926
  %v1379 = vunpack.c.l.b16 %v927
  %v1380 = vunpack.c.l.b16 %v928
  %v1381 = vunpack.c.l.b16 %v929
  %v1382 = vunpack.c.l.b16 %v930
  %v1383 = vunpack.c.l.b16 %v931
  %v1384 = vunpack.c.l.b16 %v932
  %v1385 = vunpack.c.l.b16 %v933
  %v1386 = vunpack.c.l.b16 %v934
  %v1387 = vunpack.c.l.b16 %v935
  %v1388 = vunpack.c.l.b16 %v936
  %v1389 = vunpack.c.l.b16 %v937
  %v1390 = vunpack.c.l.b16 %v938
  %v1391 = vunpack.c.l.b16 %v939
  %v1392 = vunpack.c.l.b16 %v940
  %v1393 = vunpack.c.l.b16 %v941
  %v1394 = vunpack.c.l.b16 %v942
  %v1395 = vunpack.c.l.b16 %v943
  %v1396 = vunpack.c.l.b16 %v944
  %v1397 = vunpack.c.l.b16 %v945
  %v1398 = vpack.c.b16 %v1175, %v1174
  %v1399 = vpack.c.b16 %v1177, %v1176
  %v1400 = vpack.c.b16 %v1179, %v1178
  %v1401 = vpack.c.b16 %v1181, %v1180
  %v1402 = vpack.c.b16 %v1183, %v1182
  %v1403 = vpack.c.b16 %v1185, %v1184
  %v1404 = vpack.c.b16 %v1187, %v1186
  %v1405 = vpack.c.b16 %v1189, %v1188
  %v1406 = vpack.c.b16 %v1191, %v1190
  %v1407 = vpack.c.b16 %v1193, %v1192
  %v1408 = vpack.c.b16 %v1195, %v1194
  %v1409 = vpack.c.b16 %v1197, %v1196
  %v1410 = vpack.c.b16 %v1199, %v1198
  %v1411 = vpack.c.b16 %v1201, %v1200
  %v1412 = vpack.c.b16 %v1203, %v1202
  %v1413 = vpack.c.b16 %v1205, %v1204
  %v1414 = vpack.c.b16 %v1207, %v1206
  %v1415 = vpack.c.b16 %v1209, %v1208
  %v1416 = vpack.c.b16 %v1211, %v1210
  %v1417 = vpack.c.b16 %v1213, %v1212
  %v1418 = vpack.c.b16 %v1215, %v1214
  %v1419 = vpack.c.b16 %v1217, %v1216
  %v1420 = vpack.c.b16 %v1219, %v1218
  %v1421 = vpack.c.b16 %v1221, %v1220
  %v1422 = vpack.c.b16 %v1223, %v1222
  %v1423 = vpack.c.b16 %v1225, %v1224
  %v1424 = vpack.c.b16 %v1227, %v1226
  %v1425 = vpack.c.b16 %v1229, %v1228
  %v1426 = vpack.c.b16 %v1231, %v1230
  %v1427 = vpack.c.b16 %v1233, %v1232
  %v1428 = vpack.c.b16 %v1235, %v1234
  %v1429 = vpack.c.b16 %v1237, %v1236
  %v1430 = vpack.c.b16 %v1239, %v1238
  %v1431 = vpack.c.b16 %v1241, %v1240
  %v1432 = vpack.c.b16 %v1243, %v1242
  %v1433 = vpack.c.b16 %v1245, %v1244
  %v1434 = vpack.c.b16 %v1247, %v1246
  %v1435 = vpack.c.b16 %v1249, %v1248
  %v1436 = vpack.c.b16 %v1251, %v1250
  %v1437 = vpack.c.b16 %v1253, %v1252
  %v1438 = vpack.c.b16 %v1255, %v1254
  %v1439 = vpack.c.b16 %v1257, %v1256
  %v1440 = vpack.c.b16 %v1259, %v1258
  %v1441 = vpack.c.b16 %v1261, %v1260
  %v1442 = vpack.c.b16 %v1263, %v1262
  %v1443 = vpack.c.b16 %v1265, %v1264
  %v1444 = vpack.c.b16 %v1267, %v1266
  %v1445 = vpack.c.b16 %v1269, %v1268
  %v1446 = vpack.c.b16 %v1271, %v1270
  %v1447 = vpack.c.b16 %v1273, %v1272
  %v1448 = vpack.c.b16 %v1275, %v1274
  %v1449 = vpack.c.b16 %v1277, %v1276
  %v1450 = vpack.c.b16 %v1279, %v1278
  %v1451 = vpack.c.b16 %v1281, %v1280
  %v1452 = vpack.c.b16 %v1283, %v1282
  %v1453 = vpack.c.b16 %v1285, %v1284
  %v1454 = vpack.c.b16 %v1287, %v1286
  %v1455 = vpack.c.b16 %v1289, %v1288
  %v1456 = vpack.c.b16 %v1291, %v1290
  %v1457 = vpack.c.b16 %v1293, %v1292
  %v1458 = vpack.c.b16 %v1295, %v1294
  %v1459 = vpack.c.b16 %v1297, %v1296
  %v1460 = vpack.c.b16 %v1299, %v1298
  %v1461 = vpack.c.b16 %v1301, %v1300
  %v1462 = vpack.c.b16 %v1303, %v1302
  %v1463 = vpack.c.b16 %v1305, %v1304
  %v1464 = vpack.c.b16 %v1307, %v1306
  %v1465 = vpack.c.b16 %v1309, %v1308
  %v1466 = vpack.c.b16 %v1311, %v1310
  %v1467 = vpack.c.b16 %v1313, %v1312
  %v1468 = vpack.c.b16 %v1315, %v1314
  %v1469 = vpack.c.b16 %v1317, %v1316
  %v1470 = vpack.c.b16 %v1319, %v1318
  %v1471 = vpack.c.b16 %v1321, %v1320
  %v1472 = vpack.c.b16 %v1323, %v1322
  %v1473 = vpack.c.b16 %v1325, %v1324
  %v1474 = vpack.c.b16 %v1327, %v1326
  %v1475 = vpack.c.b16 %v1329, %v1328
  %v1476 = vpack.c.b16 %v1331, %v1330
  %v1477 = vpack.c.b16 %v1333, %v1332
  %v1478 = vpack.c.b16 %v1335, %v1334
  %v1479 = vpack.c.b16 %v1337, %v1336
  %v1480 = vpack.c.b16 %v1339, %v1338
  %v1481 = vpack.c.b16 %v1341, %v1340
  %v1482 = vpack.c.b16 %v1343, %v1342
  %v1483 = vpack.c.b16 %v1345, %v1344
  %v1484 = vpack.c.b16 %v1347, %v1346
  %v1485 = vpack.c.b16 %v1349, %v1348
  %v1486 = vpack.c.b16 %v1351, %v1350
  %v1487 = vpack.c.b16 %v1353, %v1352
  %v1488 = vpack.c.b16 %v1355, %v1354
  %v1489 = vpack.c.b16 %v1357, %v1356
  %v1490 = vpack.c.b16 %v1359, %v1358
  %v1491 = vpack.c.b16 %v1361, %v1360
  %v1492 = vpack.c.b16 %v1363, %v1362
  %v1493 = vpack.c.b16 %v1365, %v1364
  %v1494 = vpack.c.b16 %v1367, %v1366
  %v1495 = vpack.c.b16 %v1369, %v1368
  %v1496 = vpack.c.b16 %v1371, %v1370
  %v1497 = vpack.c.b16 %v1373, %v1372
  %v1498 = vpack.c.b16 %v1375, %v1374
  %v1499 = vpack.c.b16 %v1377, %v1376
  %v1500 = vpack.c.b16 %v1379, %v1378
  %v1501 = vpack.c.b16 %v1381, %v1380
  %v1502 = vpack.c.b16 %v1383, %v1382
  %v1503 = vpack.c.b16 %v1385, %v1384
  %v1504 = vpack.c.b16 %v1387, %v1386
  %v1505 = vpack.c.b16 %v1389, %v1388
  %v1506 = vpack.c.b16 %v1391, %v1390
  %v1507 = vpack.c.b16 %v1393, %v1392
  %v1508 = vpack.c.b16 %v1395, %v1394
  %v1509 = vpack.c.b16 %v1397, %v1396
  %1622 = vmatpush.bf16.msra.mxu0 %v1405
  %1623 = vmatpush.bf16.msra.mxu0 %v1404
  %1624 = vmatpush.bf16.msra.mxu0 %v1403
  %1625 = vmatpush.bf16.msra.mxu0 %v1402
  %1626 = vmatpush.bf16.msra.mxu0 %v1401
  %1627 = vmatpush.bf16.msra.mxu0 %v1400
  %1628 = vmatpush.bf16.msra.mxu0 %v1399
  %1629 = vmatpush.bf16.msra.mxu0 %v1398
  %1630 = vmatmul.bf16.gmra.mxu0 %v708
  %v1631 = vpop.f32.mrf.mxu0
  %v1632 = vadd.f32 %v948, %v1631
  %v1633 = vpop.f32.mrf.mxu0
  %1634 = vdwg.mxu0
  %1635 = vmatpush.bf16.msra.mxu0 %v1413
  %1636 = vmatpush.bf16.msra.mxu0 %v1412
  %1637 = vmatpush.bf16.msra.mxu0 %v1411
  %1638 = vmatpush.bf16.msra.mxu0 %v1410
  %1639 = vmatpush.bf16.msra.mxu0 %v1409
  %1640 = vmatpush.bf16.msra.mxu0 %v1408
  %1641 = vmatpush.bf16.msra.mxu0 %v1407
  %1642 = vmatpush.bf16.msra.mxu0 %v1406
  %1643 = vmatmul.bf16.gmra.mxu0 %v709
  %v1644 = vpop.f32.mrf.mxu0
  %v1645 = vadd.f32 %v1632, %v1644
  %v1646 = vpop.f32.mrf.mxu0
  %1647 = vdwg.mxu0
  %1648 = vmatpush.bf16.msra.mxu0 %v1421
  %1649 = vmatpush.bf16.msra.mxu0 %v1420
  %1650 = vmatpush.bf16.msra.mxu0 %v1419
  %1651 = vmatpush.bf16.msra.mxu0 %v1418
  %1652 = vmatpush.bf16.msra.mxu0 %v1417
  %1653 = vmatpush.bf16.msra.mxu0 %v1416
  %1654 = vmatpush.bf16.msra.mxu0 %v1415
  %1655 = vmatpush.bf16.msra.mxu0 %v1414
  %1656 = vmatmul.bf16.gmra.mxu0 %v710
  %v1657 = vpop.f32.mrf.mxu0
  %v1658 = vadd.f32 %v1645, %v1657
  %v1659 = vpop.f32.mrf.mxu0
  %1660 = vdwg.mxu0
  %1661 = vmatpush.bf16.msra.mxu0 %v1429
  %1662 = vmatpush.bf16.msra.mxu0 %v1428
  %1663 = vmatpush.bf16.msra.mxu0 %v1427
  %1664 = vmatpush.bf16.msra.mxu0 %v1426
  %1665 = vmatpush.bf16.msra.mxu0 %v1425
  %1666 = vmatpush.bf16.msra.mxu0 %v1424
  %1667 = vmatpush.bf16.msra.mxu0 %v1423
  %1668 = vmatpush.bf16.msra.mxu0 %v1422
  %1669 = vmatmul.bf16.gmra.mxu0 %v711
  %v1670 = vpop.f32.mrf.mxu0
  %v1671 = vadd.f32 %v1658, %v1670
  %v1672 = vpop.f32.mrf.mxu0
  %1673 = vdwg.mxu0
  %1674 = vmatpush.bf16.msra.mxu0 %v1437
  %1675 = vmatpush.bf16.msra.mxu0 %v1436
  %1676 = vmatpush.bf16.msra.mxu0 %v1435
  %1677 = vmatpush.bf16.msra.mxu0 %v1434
  %1678 = vmatpush.bf16.msra.mxu0 %v1433
  %1679 = vmatpush.bf16.msra.mxu0 %v1432
  %1680 = vmatpush.bf16.msra.mxu0 %v1431
  %1681 = vmatpush.bf16.msra.mxu0 %v1430
  %1682 = vmatmul.bf16.gmra.mxu0 %v712
  %v1683 = vpop.f32.mrf.mxu0
  %v1684 = vadd.f32 %v1671, %v1683
  %v1685 = vpop.f32.mrf.mxu0
  %1686 = vdwg.mxu0
  %1687 = vmatpush.bf16.msra.mxu0 %v1445
  %1688 = vmatpush.bf16.msra.mxu0 %v1444
  %1689 = vmatpush.bf16.msra.mxu0 %v1443
  %1690 = vmatpush.bf16.msra.mxu0 %v1442
  %1691 = vmatpush.bf16.msra.mxu0 %v1441
  %1692 = vmatpush.bf16.msra.mxu0 %v1440
  %1693 = vmatpush.bf16.msra.mxu0 %v1439
  %1694 = vmatpush.bf16.msra.mxu0 %v1438
  %1695 = vmatmul.bf16.gmra.mxu0 %v713
  %v1696 = vpop.f32.mrf.mxu0
  %v1697 = vadd.f32 %v1684, %v1696
  %v1698 = vpop.f32.mrf.mxu0
  %1699 = vdwg.mxu0
  %1700 = vmatpush.bf16.msra.mxu0 %v1453
  %1701 = vmatpush.bf16.msra.mxu0 %v1452
  %1702 = vmatpush.bf16.msra.mxu0 %v1451
  %1703 = vmatpush.bf16.msra.mxu0 %v1450
  %1704 = vmatpush.bf16.msra.mxu0 %v1449
  %1705 = vmatpush.bf16.msra.mxu0 %v1448
  %1706 = vmatpush.bf16.msra.mxu0 %v1447
  %1707 = vmatpush.bf16.msra.mxu0 %v1446
  %1708 = vmatmul.bf16.gmra.mxu0 %v714
  %v1709 = vpop.f32.mrf.mxu0
  %v1710 = vadd.f32 %v1697, %v1709
  %v1711 = vpop.f32.mrf.mxu0
  %1712 = vdwg.mxu0
  %1713 = vmatpush.bf16.msra.mxu0 %v1461
  %1714 = vmatpush.bf16.msra.mxu0 %v1460
  %1715 = vmatpush.bf16.msra.mxu0 %v1459
  %1716 = vmatpush.bf16.msra.mxu0 %v1458
  %1717 = vmatpush.bf16.msra.mxu0 %v1457
  %1718 = vmatpush.bf16.msra.mxu0 %v1456
  %1719 = vmatpush.bf16.msra.mxu0 %v1455
  %1720 = vmatpush.bf16.msra.mxu0 %v1454
  %1721 = vmatmul.bf16.gmra.mxu0 %v715
  %v1722 = vpop.f32.mrf.mxu0
  %v1723 = vadd.f32 %v1710, %v1722
  %v1724 = vpop.f32.mrf.mxu0
  %1725 = vdwg.mxu0
  %1726 = vmatpush.bf16.msra.mxu0 %v1469
  %1727 = vmatpush.bf16.msra.mxu0 %v1468
  %1728 = vmatpush.bf16.msra.mxu0 %v1467
  %1729 = vmatpush.bf16.msra.mxu0 %v1466
  %1730 = vmatpush.bf16.msra.mxu0 %v1465
  %1731 = vmatpush.bf16.msra.mxu0 %v1464
  %1732 = vmatpush.bf16.msra.mxu0 %v1463
  %1733 = vmatpush.bf16.msra.mxu0 %v1462
  %1734 = vmatmul.bf16.gmra.mxu0 %v716
  %v1735 = vpop.f32.mrf.mxu0
  %v1736 = vadd.f32 %v1723, %v1735
  %v1737 = vpop.f32.mrf.mxu0
  %1738 = vdwg.mxu0
  %1739 = vmatpush.bf16.msra.mxu0 %v1477
  %1740 = vmatpush.bf16.msra.mxu0 %v1476
  %1741 = vmatpush.bf16.msra.mxu0 %v1475
  %1742 = vmatpush.bf16.msra.mxu0 %v1474
  %1743 = vmatpush.bf16.msra.mxu0 %v1473
  %1744 = vmatpush.bf16.msra.mxu0 %v1472
  %1745 = vmatpush.bf16.msra.mxu0 %v1471
  %1746 = vmatpush.bf16.msra.mxu0 %v1470
  %1747 = vmatmul.bf16.gmra.mxu0 %v717
  %v1748 = vpop.f32.mrf.mxu0
  %v1749 = vadd.f32 %v1736, %v1748
  %v1750 = vpop.f32.mrf.mxu0
  %1751 = vdwg.mxu0
  %1752 = vmatpush.bf16.msra.mxu0 %v1485
  %1753 = vmatpush.bf16.msra.mxu0 %v1484
  %1754 = vmatpush.bf16.msra.mxu0 %v1483
  %1755 = vmatpush.bf16.msra.mxu0 %v1482
  %1756 = vmatpush.bf16.msra.mxu0 %v1481
  %1757 = vmatpush.bf16.msra.mxu0 %v1480
  %1758 = vmatpush.bf16.msra.mxu0 %v1479
  %1759 = vmatpush.bf16.msra.mxu0 %v1478
  %1760 = vmatmul.bf16.gmra.mxu0 %v718
  %v1761 = vpop.f32.mrf.mxu0
  %v1762 = vadd.f32 %v1749, %v1761
  %v1763 = vpop.f32.mrf.mxu0
  %1764 = vdwg.mxu0
  %1765 = vmatpush.bf16.msra.mxu0 %v1493
  %1766 = vmatpush.bf16.msra.mxu0 %v1492
  %1767 = vmatpush.bf16.msra.mxu0 %v1491
  %1768 = vmatpush.bf16.msra.mxu0 %v1490
  %1769 = vmatpush.bf16.msra.mxu0 %v1489
  %1770 = vmatpush.bf16.msra.mxu0 %v1488
  %1771 = vmatpush.bf16.msra.mxu0 %v1487
  %1772 = vmatpush.bf16.msra.mxu0 %v1486
  %1773 = vmatmul.bf16.gmra.mxu0 %v719
  %v1774 = vpop.f32.mrf.mxu0
  %v1775 = vadd.f32 %v1762, %v1774
  %v1776 = vpop.f32.mrf.mxu0
  %1777 = vdwg.mxu0
  %1778 = vmatpush.bf16.msra.mxu0 %v1501
  %1779 = vmatpush.bf16.msra.mxu0 %v1500
  %1780 = vmatpush.bf16.msra.mxu0 %v1499
  %1781 = vmatpush.bf16.msra.mxu0 %v1498
  %1782 = vmatpush.bf16.msra.mxu0 %v1497
  %1783 = vmatpush.bf16.msra.mxu0 %v1496
  %1784 = vmatpush.bf16.msra.mxu0 %v1495
  %1785 = vmatpush.bf16.msra.mxu0 %v1494
  %1786 = vmatmul.bf16.gmra.mxu0 %v720
  %v1787 = vpop.f32.mrf.mxu0
  %v1788 = vadd.f32 %v1775, %v1787
  %v1789 = vpop.f32.mrf.mxu0
  %1790 = vdwg.mxu0
  %1791 = vmatpush.bf16.msra.mxu0 %v1509
  %1792 = vmatpush.bf16.msra.mxu0 %v1508
  %1793 = vmatpush.bf16.msra.mxu0 %v1507
  %1794 = vmatpush.bf16.msra.mxu0 %v1506
  %1795 = vmatpush.bf16.msra.mxu0 %v1505
  %1796 = vmatpush.bf16.msra.mxu0 %v1504
  %1797 = vmatpush.bf16.msra.mxu0 %v1503
  %1798 = vmatpush.bf16.msra.mxu0 %v1502
  %1799 = vmatmul.bf16.gmra.mxu0 %v721
  %v1800 = vpop.f32.mrf.mxu0
  %v1801 = vadd.f32 %v1788, %v1800
  %v1802 = vpop.f32.mrf.mxu0
  %1803 = vdwg.mxu0
  %vm1804 = vcmask 523264
  %v1805 = vsel %vm1804, %v1801, -inf
  %1806 = vmax.xlane.f32.xlu0 %v1805
  %v1807 = vpop.xlane.xlu0 %1806
  %v1808 = vsub.f32 %v1801, %v1807
  %v1809 = vmul.f32 %v1808, 1.442695
  %v1810 = vpow.pop %v1809
  %v1811 = vsel %vm1804, %v1810, 0.0
  %1812 = vadd.xlane.f32.xlu0 %v1811
  %v1813 = vpop.xlane.xlu0 %1812
  %v1814 = vrcp.pop %v1813
  %v1815 = vmul.f32 %v1813, %v1814
  %v1816 = vsub.f32 1.0, %v1815
  %v1817 = vmul.f32 %v1814, %v1816
  %v1818 = vadd.f32 %v1814, %v1817
  %vm1819 = vweird.f32 %v1813
  %vm1820 = vweird.f32 %v1814
  %vm1821 = vmor %vm1819, %vm1820
  %v1822 = vsel %vm1821, %v1814, %v1818
  %v1823 = vand.u32 2147483647, %v1813
  %vm1824 = vcmp.eq.f32.partialorder %v1823, 8.507059e+37
  %v1825 = vand.u32 %v1813, 2147483648
  %v1826 = vor.u32 1.1754944e-38, %v1825
  %v1827 = vsel %vm1824, %v1826, %v1822
  %v1828 = vmul.f32 %v1810, %v1827
  %1829 = vst.msk [vmem:[%s5] sm:$0xff] %vm1804, %v1828
  // Predicated region
  $region22: #{feedforward_pallas.1} parent=0 // pred_check
    _
  $region23: #{feedforward_pallas.1} parent=0 // pred_check_branch
    %1831 = sbr.rel (0) target = $region25
  $region24: #{feedforward_pallas.1} parent=0 // pred_region
    _
  $region25: #{feedforward_pallas.1} parent=0 // pred_fallthru
    _
  // Predicated region
  $region26: #{feedforward_pallas.1} parent=0 // pred_check
    _
  $region27: #{feedforward_pallas.1} parent=0 // pred_check_branch
    %1833 = sbr.rel (0) target = $region29
  $region28: #{feedforward_pallas.1} parent=0 // pred_region
    _
  $region29: #{feedforward_pallas.1} parent=0 // pred_fallthru
    _

</llo_original>
